<compile_context>
chip_gen: v7x
topology: tpu7x:2x2x1
jax: 0.10.0
libtpu: 0.0.40
codegen_flags: <defaults>
</compile_context>

<pallas_src>
import jax
import jax.numpy as jnp
from jax.experimental import pallas as pl
from jax.experimental.pallas import tpu as pltpu


def _embedding_gather_kernel(ids_ref, w_ref, out_ref):
    # ids_ref: (TOK, 1)     int32 token ids for this token block (VMEM).
    # w_ref:   (VB, n_embd) vocab block of the embedding table (VMEM resident).
    # out_ref: (TOK, n_embd) output rows for this token block; resident across
    #          the vocab grid axis, accumulated with pl.when init/update.
    v = pl.program_id(1)
    tok = ids_ref.shape[0]
    vb = w_ref.shape[0]

    ids = ids_ref[...]  # (TOK, 1)

    # Global vocab ids covered by this vocab block: [v*VB, (v+1)*VB).
    col = jax.lax.broadcasted_iota(jnp.int32, (tok, vb), 1) + v * vb
    onehot = (col == ids).astype(w_ref.dtype)  # (TOK, VB), exact 0/1

    partial = jnp.dot(
        onehot,
        w_ref[...],
        preferred_element_type=jnp.float32,
        precision=jax.lax.Precision.HIGHEST,  # keep f32-exact row selection
    )

    @pl.when(v == 0)
    def _():
        out_ref[...] = partial.astype(out_ref.dtype)

    @pl.when(v > 0)
    def _():
        out_ref[...] = out_ref[...] + partial.astype(out_ref.dtype)


def time2vec_forward(weight: jax.Array, x: jax.Array,
                     *, tok_block: int = 256, vocab_block: int = 2048) -> jax.Array:
    """Embedding lookup: returns weight[x], shape x.shape + (n_embd,)."""
    vocab_size, n_embd = weight.shape
    orig_shape = x.shape

    ids = x.reshape(-1).astype(jnp.int32)
    n_tokens = ids.shape[0]

    # Token tile: batched, multiple of 8 (sublane granularity).
    tok = tok_block if n_tokens >= tok_block else max(8, -(-n_tokens // 8) * 8)
    n_padded = -(-n_tokens // tok) * tok
    if n_padded != n_tokens:
        ids = jnp.pad(ids, (0, n_padded - n_tokens))
    ids2d = ids.reshape(n_padded, 1)

    # Vocab tile: whole table resident in VMEM if small enough; otherwise
    # block it (VMEM budget, e.g. 64 MiB on v7x) and accumulate over the
    # last ("arbitrary") grid axis.  Padded rows are zero, and ids never
    # point at them, so they contribute nothing.
    if vocab_size <= vocab_block:
        vb = vocab_size
        w = weight
    else:
        vb = vocab_block
        v_padded = -(-vocab_size // vb) * vb
        w = weight if v_padded == vocab_size else jnp.pad(
            weight, ((0, v_padded - vocab_size), (0, 0)))
    v_blocks = w.shape[0] // vb

    out_flat = pl.pallas_call(
        _embedding_gather_kernel,
        out_shape=jax.ShapeDtypeStruct((n_padded, n_embd), weight.dtype),
        grid=(n_padded // tok, v_blocks),
        in_specs=[
            pl.BlockSpec((tok, 1), lambda i, v: (i, 0)),          # token ids
            pl.BlockSpec((vb, n_embd), lambda i, v: (v, 0)),      # table block
        ],
        out_specs=pl.BlockSpec((tok, n_embd), lambda i, v: (i, 0)),
        compiler_params=pltpu.CompilerParams(
            dimension_semantics=("parallel", "arbitrary"),
        ),
    )(ids2d, w)

    if n_padded != n_tokens:
        out_flat = out_flat[:n_tokens]
    return out_flat.reshape(*orig_shape, n_embd)


if __name__ == "__main__":
    # Small, deterministic setup consistent with the module's __init__.
    vocab_size = 64
    n_embd = 32
    batch, seq = 2, 8

    key = jax.random.PRNGKey(0)
    k_w, k_x = jax.random.split(key)

    # nn.Embedding default init ~ N(0, 1).
    weight = jax.random.normal(k_w, (vocab_size, n_embd), dtype=jnp.float32)
    x = jax.random.randint(k_x, (batch, seq), 0, vocab_size, dtype=jnp.int32)

    out = time2vec_forward(weight, x)
    out = jax.block_until_ready(out)

    # Correctness check against plain-JAX reference (torch: weight[x]).
    ref = weight[x]
    assert out.shape == (batch, seq, n_embd), out.shape
    assert jnp.allclose(out, ref, atol=1e-5, rtol=1e-5), \
        "mismatch vs reference embedding lookup"

    print("KERNEL_OK")
</pallas_src>

<mosaic_0001>
module attributes {stable_mosaic.version = 11 : i64} {
  func.func @_embedding_gather_kernel(%arg0: i32, %arg1: i32, %arg2: memref<16x1xi32, #tpu.memory_space<vmem>>, %arg3: memref<64x32xf32, #tpu.memory_space<vmem>>, %arg4: memref<16x32xf32, #tpu.memory_space<vmem>>) attributes {dimension_semantics = [#tpu.dimension_semantics<parallel>, #tpu.dimension_semantics<arbitrary>], iteration_bounds = array<i64: 1, 1>, scalar_prefetch = 0 : i64, scratch_operands = 0 : i64, tpu.core_type = #tpu.core_type<tc>, window_params = [{transform_indices = @transform_0, window_bounds = array<i64: 16, 1>}, {transform_indices = @transform_1, window_bounds = array<i64: 64, 32>}, {transform_indices = @transform_2, window_bounds = array<i64: 16, 32>}]} {
    %c0 = arith.constant 0 : index
    %c0_0 = arith.constant 0 : index
    %0 = vector.load %arg2[%c0, %c0_0] : memref<16x1xi32, #tpu.memory_space<vmem>>, vector<16x1xi32>
    %1 = tpu.iota {dimensions = array<i32: 1>} : vector<16x64xi32>
    %c64_i32 = arith.constant 64 : i32
    %2 = arith.muli %arg1, %c64_i32 : i32
    %3 = vector.broadcast %2 : i32 to vector<16x64xi32>
    %4 = arith.addi %1, %3 : vector<16x64xi32>
    %5 = vector.broadcast %0 : vector<16x1xi32> to vector<16x64xi32>
    %6 = arith.cmpi eq, %4, %5 : vector<16x64xi32>
    %7 = arith.extui %6 : vector<16x64xi1> to vector<16x64xi32>
    %8 = arith.sitofp %7 : vector<16x64xi32> to vector<16x64xf32>
    %c0_1 = arith.constant 0 : index
    %c0_2 = arith.constant 0 : index
    %9 = vector.load %arg3[%c0_1, %c0_2] : memref<64x32xf32, #tpu.memory_space<vmem>>, vector<64x32xf32>
    %cst = arith.constant dense<0.000000e+00> : vector<16x32xf32>
    %10 = tpu.matmul %8, %9, %cst {dimension_numbers = #tpu.dot_dimension_numbers<[1], [0], [0], [1], [0, 0, 1, 1], [], []>, precision = #tpu.contract_precision<fp32>} : vector<16x64xf32>, vector<64x32xf32>, vector<16x32xf32> -> vector<16x32xf32>
    %c0_i32 = arith.constant 0 : i32
    %11 = arith.cmpi eq, %arg1, %c0_i32 : i32
    %12 = arith.extui %11 : i1 to i32
    %c0_i32_3 = arith.constant 0 : i32
    %13 = arith.cmpi ne, %12, %c0_i32_3 : i32
    scf.if %13 {
      %c0_6 = arith.constant 0 : index
      %c0_7 = arith.constant 0 : index
      %17 = vector.load %arg4[%c0_6, %c0_7] : memref<16x32xf32, #tpu.memory_space<vmem>>, vector<16x32xf32>
      tpu.vector_store %arg4[%c0_6, %c0_7], %10 {strides = array<i32>} : memref<16x32xf32, #tpu.memory_space<vmem>>, vector<16x32xf32>,
    } else {
    }
    %c0_i32_4 = arith.constant 0 : i32
    %14 = arith.cmpi sgt, %arg1, %c0_i32_4 : i32
    %15 = arith.extui %14 : i1 to i32
    %c0_i32_5 = arith.constant 0 : i32
    %16 = arith.cmpi ne, %15, %c0_i32_5 : i32
    scf.if %16 {
      %c0_6 = arith.constant 0 : index
      %c0_7 = arith.constant 0 : index
      %17 = vector.load %arg4[%c0_6, %c0_7] : memref<16x32xf32, #tpu.memory_space<vmem>>, vector<16x32xf32>
      %18 = arith.addf %17, %10 : vector<16x32xf32>
      %c0_8 = arith.constant 0 : index
      %c0_9 = arith.constant 0 : index
      %19 = vector.load %arg4[%c0_8, %c0_9] : memref<16x32xf32, #tpu.memory_space<vmem>>, vector<16x32xf32>
      tpu.vector_store %arg4[%c0_8, %c0_9], %18 {strides = array<i32>} : memref<16x32xf32, #tpu.memory_space<vmem>>, vector<16x32xf32>,
    } else {
    }
    return
  }
  func.func @transform_0(%arg0: i32, %arg1: i32) -> (i32, i32) {
    %c0_i32 = arith.constant 0 : i32
    %c0_i32_0 = arith.constant 0 : i32
    return %arg0, %c0_i32 : i32, i32
  }
  func.func @transform_1(%arg0: i32, %arg1: i32) -> (i32, i32) {
    %c0_i32 = arith.constant 0 : i32
    %c0_i32_0 = arith.constant 0 : i32
    return %arg1, %c0_i32 : i32, i32
  }
  func.func @transform_2(%arg0: i32, %arg1: i32) -> (i32, i32) {
    %c0_i32 = arith.constant 0 : i32
    %c0_i32_0 = arith.constant 0 : i32
    return %arg0, %c0_i32 : i32, i32
  }
}

</mosaic_0001>

<llo_original>
// kernel: tpu_custom_call.1
$region0: #{tpu_custom_call.1}
  #allocation0 [shape = 'u32[]', space=smem, size = 0x4, offset = 0x4, fixed_abs, tag = 'smem constant byte address 0x4 - core index']
  #allocation1 [shape = 'u32[144,128]{1,0:T(1,128)}', space=vmem, size = 0x12000, scoped, tag = 'internal scratch']
  %s0 = inlined_call_operand.vmem [shape: s32[16,1], index: 0, kind: input, shape index: {}]
  %s1 = inlined_call_operand.vmem [shape: f32[64,32], index: 1, kind: input, shape index: {}]
  %s2 = inlined_call_operand.hbm [shape: f32[16,32], index: 2, kind: output, shape index: {}]
  %s3 = sld [smem:[#allocation0]]
  $region26: #{tpu_custom_call.1} parent=0
    _
  %s5 = ssub.s32 1, %s3
  %s6 = scalar_select 0, %s5, %s3
  $region1: #{tpu_custom_call.1} parent=0
    #allocation2 [shape = 'u8[8192]{0}', space=vmem, size = 0x2000, scoped, tag = 'output window, operand 0, single buffered']
    #allocation3 [shape = 's32[1]{0}', space=sflag, size = 0x4, scoped, tag = 'scoped memory for tpu_custom_call.1']
    %7 = vsyncpa [#allocation3], 0
    // Predicated region
    $region2: #{tpu_custom_call.1} parent=1 // pred_check
      _
    $region3: #{tpu_custom_call.1} parent=1 // pred_check_branch
      %9 = sbr.rel (0) target = $region5
    $region4: #{tpu_custom_call.1} parent=1 // pred_region
      _
    $region5: #{tpu_custom_call.1} parent=1 // pred_fallthru
      _
    // Predicated region
    $region6: #{tpu_custom_call.1} parent=1 // pred_check
      _
    $region7: #{tpu_custom_call.1} parent=1 // pred_check_branch
      %11 = sbr.rel (0) target = $region9
    $region8: #{tpu_custom_call.1} parent=1 // pred_region
      _
    $region9: #{tpu_custom_call.1} parent=1 // pred_fallthru
      _
    %v12 = vld [vmem:[%s0] sm:$0xff]
    %v13 = vld [vmem:[%s0 + $0x8] sm:$0xff]
    %v14 = vlaneseq
    %v15 = vand.u32 %v14, 127
    %s16 = smul.u32 0, 64
    %v17 = vstv %s16
    %v18 = vadd.s32 %v15, %v17
    %19 = vset.pattern.permute.xlu0 0
    %20 = vperm.xlu0 %19, %v12
    %v21 = vpop.permute.xlu0 %20
    %22 = vset.pattern.permute.xlu0 0
    %23 = vperm.xlu0 %22, %v13
    %v24 = vpop.permute.xlu0 %23
    %vm25 = vcmp.eq.s32.totalorder %v18, %v21
    %vm26 = vcmp.eq.s32.totalorder %v18, %v24
    %v27 = vsel %vm25, 1, 0
    %v28 = vsel %vm26, 1, 0
    %v29 = vcvt.s32.f32 %v27
    %v30 = vcvt.s32.f32 %v28
    %v31 = vld [vmem:[%s1] sm:$0xff]
    %v32 = vld [vmem:[%s1 + $0x8] sm:$0xff]
    %v33 = vld [vmem:[%s1 + $0x10] sm:$0xff]
    %v34 = vld [vmem:[%s1 + $0x18] sm:$0xff]
    %v35 = vld [vmem:[%s1 + $0x20] sm:$0xff]
    %v36 = vld [vmem:[%s1 + $0x28] sm:$0xff]
    %v37 = vld [vmem:[%s1 + $0x30] sm:$0xff]
    %v38 = vld [vmem:[%s1 + $0x38] sm:$0xff]
    %vm39 = vcmask 523264
    %v41 = vsel %vm39, %v29, 0
    %v44 = vsel %vm39, %v30, 0
    %46 = vmatprep.subr.mxu0 0.0
    %v47 = vand.u32 %v31, 4294901760
    %48 = vmatpush1.msra.mxu0 %v47
    %49 = vmatprep.subr.mxu0 0.0
    %v50 = vand.u32 %v32, 4294901760
    %51 = vmatpush1.msra.mxu0 %v50
    %52 = vmatprep.subr.mxu0 0.0
    %v53 = vand.u32 %v33, 4294901760
    %54 = vmatpush1.msra.mxu0 %v53
    %55 = vmatprep.subr.mxu0 0.0
    %v56 = vand.u32 %v34, 4294901760
    %57 = vmatpush1.msra.mxu0 %v56
    %58 = vmatprep.subr.mxu0 0.0
    %v59 = vand.u32 %v35, 4294901760
    %60 = vmatpush1.msra.mxu0 %v59
    %61 = vmatprep.subr.mxu0 0.0
    %v62 = vand.u32 %v36, 4294901760
    %63 = vmatpush1.msra.mxu0 %v62
    %64 = vmatprep.subr.mxu0 0.0
    %v65 = vand.u32 %v37, 4294901760
    %66 = vmatpush1.msra.mxu0 %v65
    %67 = vmatprep.subr.mxu0 0.0
    %v68 = vand.u32 %v38, 4294901760
    %69 = vmatpush1.msra.mxu0 %v68
    %70 = vmatprep.subr.mxu0 0.0
    %71 = vmatpush1.msra.mxu0 0.0
    %72 = vmatprep.subr.mxu0 0.0
    %73 = vmatpush1.msra.mxu0 0.0
    %74 = vmatprep.subr.mxu0 0.0
    %75 = vmatpush1.msra.mxu0 0.0
    %76 = vmatprep.subr.mxu0 0.0
    %77 = vmatpush1.msra.mxu0 0.0
    %78 = vmatprep.subr.mxu0 0.0
    %79 = vmatpush1.msra.mxu0 0.0
    %80 = vmatprep.subr.mxu0 0.0
    %81 = vmatpush1.msra.mxu0 0.0
    %82 = vmatprep.subr.mxu0 0.0
    %83 = vmatpush1.msra.mxu0 0.0
    %84 = vmatprep.subr.mxu0 0.0
    %85 = vmatpush1.msra.mxu0 0.0
    %86 = vmatprep.subr.mxu0 0.0
    %87 = vmatpush1.msra.mxu0 0.0
    %88 = vmatprep.subr.mxu0 0.0
    %89 = vmatpush1.msra.mxu0 0.0
    %90 = vmatprep.subr.mxu0 0.0
    %91 = vmatpush1.msra.mxu0 0.0
    %92 = vmatprep.subr.mxu0 0.0
    %93 = vmatpush1.msra.mxu0 0.0
    %94 = vmatprep.subr.mxu0 0.0
    %95 = vmatpush1.msra.mxu0 0.0
    %96 = vmatprep.subr.mxu0 0.0
    %97 = vmatpush1.msra.mxu0 0.0
    %98 = vmatprep.subr.mxu0 0.0
    %99 = vmatpush1.msra.mxu0 0.0
    %100 = vmatprep.subr.mxu0 0.0
    %101 = vmatpush1.msra.mxu0 0.0
    %102 = vmatprep.subr.mxu0 0.0
    %103 = vmatpush1.msra.mxu0 0.0
    %104 = vmatprep.subr.mxu0 0.0
    %105 = vmatpush1.msra.mxu0 0.0
    %106 = vmatprep.subr.mxu0 0.0
    %107 = vmatpush1.msra.mxu0 0.0
    %108 = vmatprep.subr.mxu0 0.0
    %109 = vmatpush1.msra.mxu0 0.0
    %110 = vmatprep.subr.mxu0 0.0
    %111 = vmatpush1.msra.mxu0 0.0
    %112 = vmatprep.subr.mxu0 0.0
    %113 = vmatpush1.msra.mxu0 0.0
    %114 = vmatprep.subr.mxu0 0.0
    %115 = vmatpush1.msra.mxu0 0.0
    %116 = vmatprep.subr.mxu0 0.0
    %117 = vmatpush1.msra.mxu0 0.0
    %118 = vmatprep.mubr.f32.mxu0 0.0
    %v119 = vand.u32 %v41, 4294901760
    %v120 = vsub.f32 %v41, %v119
    %v121 = vand.u32 %v120, 4294901760
    %v122 = vsub.f32 %v120, %v121
    %v123 = vand.u32 %v122, 4294901760
    %124 = vmatmul.mubr.f32.gmra.mrb[0].mxu0 %v123
    %v125 = vpop.f32.mrb[0].mxu0
    %v126 = vadd.f32 0.0, %v125
    %v127 = vpop.f32.mrb[0].mxu0
    %128 = vmatprep.mubr.f32.mxu0 0.0
    %v129 = vand.u32 %v44, 4294901760
    %v130 = vsub.f32 %v44, %v129
    %v131 = vand.u32 %v130, 4294901760
    %v132 = vsub.f32 %v130, %v131
    %v133 = vand.u32 %v132, 4294901760
    %134 = vmatmul.mubr.f32.gmra.mrb[0].mxu0 %v133
    %v135 = vpop.f32.mrb[0].mxu0
    %v136 = vadd.f32 0.0, %v135
    %v137 = vpop.f32.mrb[0].mxu0
    %138 = vdwg.mxu0
    %139 = vmatprep.subr.mxu0 0.0
    %v140 = vand.u32 %v31, 4294901760
    %v141 = vsub.f32 %v31, %v140
    %v142 = vand.u32 %v141, 4294901760
    %v143 = vsub.f32 %v141, %v142
    %v144 = vand.u32 %v143, 4294901760
    %145 = vmatpush1.msra.mxu0 %v144
    %146 = vmatprep.subr.mxu0 0.0
    %v147 = vand.u32 %v32, 4294901760
    %v148 = vsub.f32 %v32, %v147
    %v149 = vand.u32 %v148, 4294901760
    %v150 = vsub.f32 %v148, %v149
    %v151 = vand.u32 %v150, 4294901760
    %152 = vmatpush1.msra.mxu0 %v151
    %153 = vmatprep.subr.mxu0 0.0
    %v154 = vand.u32 %v33, 4294901760
    %v155 = vsub.f32 %v33, %v154
    %v156 = vand.u32 %v155, 4294901760
    %v157 = vsub.f32 %v155, %v156
    %v158 = vand.u32 %v157, 4294901760
    %159 = vmatpush1.msra.mxu0 %v158
    %160 = vmatprep.subr.mxu0 0.0
    %v161 = vand.u32 %v34, 4294901760
    %v162 = vsub.f32 %v34, %v161
    %v163 = vand.u32 %v162, 4294901760
    %v164 = vsub.f32 %v162, %v163
    %v165 = vand.u32 %v164, 4294901760
    %166 = vmatpush1.msra.mxu0 %v165
    %167 = vmatprep.subr.mxu0 0.0
    %v168 = vand.u32 %v35, 4294901760
    %v169 = vsub.f32 %v35, %v168
    %v170 = vand.u32 %v169, 4294901760
    %v171 = vsub.f32 %v169, %v170
    %v172 = vand.u32 %v171, 4294901760
    %173 = vmatpush1.msra.mxu0 %v172
    %174 = vmatprep.subr.mxu0 0.0
    %v175 = vand.u32 %v36, 4294901760
    %v176 = vsub.f32 %v36, %v175
    %v177 = vand.u32 %v176, 4294901760
    %v178 = vsub.f32 %v176, %v177
    %v179 = vand.u32 %v178, 4294901760
    %180 = vmatpush1.msra.mxu0 %v179
    %181 = vmatprep.subr.mxu0 0.0
    %v182 = vand.u32 %v37, 4294901760
    %v183 = vsub.f32 %v37, %v182
    %v184 = vand.u32 %v183, 4294901760
    %v185 = vsub.f32 %v183, %v184
    %v186 = vand.u32 %v185, 4294901760
    %187 = vmatpush1.msra.mxu0 %v186
    %188 = vmatprep.subr.mxu0 0.0
    %v189 = vand.u32 %v38, 4294901760
    %v190 = vsub.f32 %v38, %v189
    %v191 = vand.u32 %v190, 4294901760
    %v192 = vsub.f32 %v190, %v191
    %v193 = vand.u32 %v192, 4294901760
    %194 = vmatpush1.msra.mxu0 %v193
    %195 = vmatprep.subr.mxu0 0.0
    %196 = vmatpush1.msra.mxu0 0.0
    %197 = vmatprep.subr.mxu0 0.0
    %198 = vmatpush1.msra.mxu0 0.0
    %199 = vmatprep.subr.mxu0 0.0
    %200 = vmatpush1.msra.mxu0 0.0
    %201 = vmatprep.subr.mxu0 0.0
    %202 = vmatpush1.msra.mxu0 0.0
    %203 = vmatprep.subr.mxu0 0.0
    %204 = vmatpush1.msra.mxu0 0.0
    %205 = vmatprep.subr.mxu0 0.0
    %206 = vmatpush1.msra.mxu0 0.0
    %207 = vmatprep.subr.mxu0 0.0
    %208 = vmatpush1.msra.mxu0 0.0
    %209 = vmatprep.subr.mxu0 0.0
    %210 = vmatpush1.msra.mxu0 0.0
    %211 = vmatprep.subr.mxu0 0.0
    %212 = vmatpush1.msra.mxu0 0.0
    %213 = vmatprep.subr.mxu0 0.0
    %214 = vmatpush1.msra.mxu0 0.0
    %215 = vmatprep.subr.mxu0 0.0
    %216 = vmatpush1.msra.mxu0 0.0
    %217 = vmatprep.subr.mxu0 0.0
    %218 = vmatpush1.msra.mxu0 0.0
    %219 = vmatprep.subr.mxu0 0.0
    %220 = vmatpush1.msra.mxu0 0.0
    %221 = vmatprep.subr.mxu0 0.0
    %222 = vmatpush1.msra.mxu0 0.0
    %223 = vmatprep.subr.mxu0 0.0
    %224 = vmatpush1.msra.mxu0 0.0
    %225 = vmatprep.subr.mxu0 0.0
    %226 = vmatpush1.msra.mxu0 0.0
    %227 = vmatprep.subr.mxu0 0.0
    %228 = vmatpush1.msra.mxu0 0.0
    %229 = vmatprep.subr.mxu0 0.0
    %230 = vmatpush1.msra.mxu0 0.0
    %231 = vmatprep.subr.mxu0 0.0
    %232 = vmatpush1.msra.mxu0 0.0
    %233 = vmatprep.subr.mxu0 0.0
    %234 = vmatpush1.msra.mxu0 0.0
    %235 = vmatprep.subr.mxu0 0.0
    %236 = vmatpush1.msra.mxu0 0.0
    %237 = vmatprep.subr.mxu0 0.0
    %238 = vmatpush1.msra.mxu0 0.0
    %239 = vmatprep.subr.mxu0 0.0
    %240 = vmatpush1.msra.mxu0 0.0
    %241 = vmatprep.subr.mxu0 0.0
    %242 = vmatpush1.msra.mxu0 0.0
    %243 = vmatprep.mubr.f32.mxu0 0.0
    %v244 = vand.u32 %v41, 4294901760
    %245 = vmatmul.mubr.f32.gmra.mrb[0].mxu0 %v244
    %v246 = vpop.f32.mrb[0].mxu0
    %v247 = vadd.f32 %v126, %v246
    %v248 = vpop.f32.mrb[0].mxu0
    %249 = vmatprep.mubr.f32.mxu0 0.0
    %v250 = vand.u32 %v44, 4294901760
    %251 = vmatmul.mubr.f32.gmra.mrb[0].mxu0 %v250
    %v252 = vpop.f32.mrb[0].mxu0
    %v253 = vadd.f32 %v136, %v252
    %v254 = vpop.f32.mrb[0].mxu0
    %255 = vdwg.mxu0
    %256 = vmatprep.subr.mxu0 0.0
    %v257 = vand.u32 %v31, 4294901760
    %v258 = vsub.f32 %v31, %v257
    %259 = vmatpush1.msra.mxu0 %v258
    %260 = vmatprep.subr.mxu0 0.0
    %v261 = vand.u32 %v32, 4294901760
    %v262 = vsub.f32 %v32, %v261
    %263 = vmatpush1.msra.mxu0 %v262
    %264 = vmatprep.subr.mxu0 0.0
    %v265 = vand.u32 %v33, 4294901760
    %v266 = vsub.f32 %v33, %v265
    %267 = vmatpush1.msra.mxu0 %v266
    %268 = vmatprep.subr.mxu0 0.0
    %v269 = vand.u32 %v34, 4294901760
    %v270 = vsub.f32 %v34, %v269
    %271 = vmatpush1.msra.mxu0 %v270
    %272 = vmatprep.subr.mxu0 0.0
    %v273 = vand.u32 %v35, 4294901760
    %v274 = vsub.f32 %v35, %v273
    %275 = vmatpush1.msra.mxu0 %v274
    %276 = vmatprep.subr.mxu0 0.0
    %v277 = vand.u32 %v36, 4294901760
    %v278 = vsub.f32 %v36, %v277
    %279 = vmatpush1.msra.mxu0 %v278
    %280 = vmatprep.subr.mxu0 0.0
    %v281 = vand.u32 %v37, 4294901760
    %v282 = vsub.f32 %v37, %v281
    %283 = vmatpush1.msra.mxu0 %v282
    %284 = vmatprep.subr.mxu0 0.0
    %v285 = vand.u32 %v38, 4294901760
    %v286 = vsub.f32 %v38, %v285
    %287 = vmatpush1.msra.mxu0 %v286
    %288 = vmatprep.subr.mxu0 0.0
    %289 = vmatpush1.msra.mxu0 0.0
    %290 = vmatprep.subr.mxu0 0.0
    %291 = vmatpush1.msra.mxu0 0.0
    %292 = vmatprep.subr.mxu0 0.0
    %293 = vmatpush1.msra.mxu0 0.0
    %294 = vmatprep.subr.mxu0 0.0
    %295 = vmatpush1.msra.mxu0 0.0
    %296 = vmatprep.subr.mxu0 0.0
    %297 = vmatpush1.msra.mxu0 0.0
    %298 = vmatprep.subr.mxu0 0.0
    %299 = vmatpush1.msra.mxu0 0.0
    %300 = vmatprep.subr.mxu0 0.0
    %301 = vmatpush1.msra.mxu0 0.0
    %302 = vmatprep.subr.mxu0 0.0
    %303 = vmatpush1.msra.mxu0 0.0
    %304 = vmatprep.subr.mxu0 0.0
    %305 = vmatpush1.msra.mxu0 0.0
    %306 = vmatprep.subr.mxu0 0.0
    %307 = vmatpush1.msra.mxu0 0.0
    %308 = vmatprep.subr.mxu0 0.0
    %309 = vmatpush1.msra.mxu0 0.0
    %310 = vmatprep.subr.mxu0 0.0
    %311 = vmatpush1.msra.mxu0 0.0
    %312 = vmatprep.subr.mxu0 0.0
    %313 = vmatpush1.msra.mxu0 0.0
    %314 = vmatprep.subr.mxu0 0.0
    %315 = vmatpush1.msra.mxu0 0.0
    %316 = vmatprep.subr.mxu0 0.0
    %317 = vmatpush1.msra.mxu0 0.0
    %318 = vmatprep.subr.mxu0 0.0
    %319 = vmatpush1.msra.mxu0 0.0
    %320 = vmatprep.subr.mxu0 0.0
    %321 = vmatpush1.msra.mxu0 0.0
    %322 = vmatprep.subr.mxu0 0.0
    %323 = vmatpush1.msra.mxu0 0.0
    %324 = vmatprep.subr.mxu0 0.0
    %325 = vmatpush1.msra.mxu0 0.0
    %326 = vmatprep.subr.mxu0 0.0
    %327 = vmatpush1.msra.mxu0 0.0
    %328 = vmatprep.subr.mxu0 0.0
    %329 = vmatpush1.msra.mxu0 0.0
    %330 = vmatprep.subr.mxu0 0.0
    %331 = vmatpush1.msra.mxu0 0.0
    %332 = vmatprep.subr.mxu0 0.0
    %333 = vmatpush1.msra.mxu0 0.0
    %334 = vmatprep.subr.mxu0 0.0
    %335 = vmatpush1.msra.mxu0 0.0
    %336 = vmatprep.mubr.f32.mxu0 0.0
    %v337 = vand.u32 %v41, 4294901760
    %v338 = vsub.f32 %v41, %v337
    %339 = vmatmul.mubr.f32.gmra.mrb[0].mxu0 %v338
    %v340 = vpop.f32.mrb[0].mxu0
    %v341 = vadd.f32 %v247, %v340
    %v342 = vpop.f32.mrb[0].mxu0
    %343 = vmatprep.mubr.f32.mxu0 0.0
    %v344 = vand.u32 %v44, 4294901760
    %v345 = vsub.f32 %v44, %v344
    %346 = vmatmul.mubr.f32.gmra.mrb[0].mxu0 %v345
    %v347 = vpop.f32.mrb[0].mxu0
    %v348 = vadd.f32 %v253, %v347
    %v349 = vpop.f32.mrb[0].mxu0
    %350 = vdwg.mxu0
    %351 = vmatprep.subr.mxu0 0.0
    %v352 = vand.u32 %v31, 4294901760
    %353 = vmatpush1.msra.mxu0 %v352
    %354 = vmatprep.subr.mxu0 0.0
    %v355 = vand.u32 %v32, 4294901760
    %356 = vmatpush1.msra.mxu0 %v355
    %357 = vmatprep.subr.mxu0 0.0
    %v358 = vand.u32 %v33, 4294901760
    %359 = vmatpush1.msra.mxu0 %v358
    %360 = vmatprep.subr.mxu0 0.0
    %v361 = vand.u32 %v34, 4294901760
    %362 = vmatpush1.msra.mxu0 %v361
    %363 = vmatprep.subr.mxu0 0.0
    %v364 = vand.u32 %v35, 4294901760
    %365 = vmatpush1.msra.mxu0 %v364
    %366 = vmatprep.subr.mxu0 0.0
    %v367 = vand.u32 %v36, 4294901760
    %368 = vmatpush1.msra.mxu0 %v367
    %369 = vmatprep.subr.mxu0 0.0
    %v370 = vand.u32 %v37, 4294901760
    %371 = vmatpush1.msra.mxu0 %v370
    %372 = vmatprep.subr.mxu0 0.0
    %v373 = vand.u32 %v38, 4294901760
    %374 = vmatpush1.msra.mxu0 %v373
    %375 = vmatprep.subr.mxu0 0.0
    %376 = vmatpush1.msra.mxu0 0.0
    %377 = vmatprep.subr.mxu0 0.0
    %378 = vmatpush1.msra.mxu0 0.0
    %379 = vmatprep.subr.mxu0 0.0
    %380 = vmatpush1.msra.mxu0 0.0
    %381 = vmatprep.subr.mxu0 0.0
    %382 = vmatpush1.msra.mxu0 0.0
    %383 = vmatprep.subr.mxu0 0.0
    %384 = vmatpush1.msra.mxu0 0.0
    %385 = vmatprep.subr.mxu0 0.0
    %386 = vmatpush1.msra.mxu0 0.0
    %387 = vmatprep.subr.mxu0 0.0
    %388 = vmatpush1.msra.mxu0 0.0
    %389 = vmatprep.subr.mxu0 0.0
    %390 = vmatpush1.msra.mxu0 0.0
    %391 = vmatprep.subr.mxu0 0.0
    %392 = vmatpush1.msra.mxu0 0.0
    %393 = vmatprep.subr.mxu0 0.0
    %394 = vmatpush1.msra.mxu0 0.0
    %395 = vmatprep.subr.mxu0 0.0
    %396 = vmatpush1.msra.mxu0 0.0
    %397 = vmatprep.subr.mxu0 0.0
    %398 = vmatpush1.msra.mxu0 0.0
    %399 = vmatprep.subr.mxu0 0.0
    %400 = vmatpush1.msra.mxu0 0.0
    %401 = vmatprep.subr.mxu0 0.0
    %402 = vmatpush1.msra.mxu0 0.0
    %403 = vmatprep.subr.mxu0 0.0
    %404 = vmatpush1.msra.mxu0 0.0
    %405 = vmatprep.subr.mxu0 0.0
    %406 = vmatpush1.msra.mxu0 0.0
    %407 = vmatprep.subr.mxu0 0.0
    %408 = vmatpush1.msra.mxu0 0.0
    %409 = vmatprep.subr.mxu0 0.0
    %410 = vmatpush1.msra.mxu0 0.0
    %411 = vmatprep.subr.mxu0 0.0
    %412 = vmatpush1.msra.mxu0 0.0
    %413 = vmatprep.subr.mxu0 0.0
    %414 = vmatpush1.msra.mxu0 0.0
    %415 = vmatprep.subr.mxu0 0.0
    %416 = vmatpush1.msra.mxu0 0.0
    %417 = vmatprep.subr.mxu0 0.0
    %418 = vmatpush1.msra.mxu0 0.0
    %419 = vmatprep.subr.mxu0 0.0
    %420 = vmatpush1.msra.mxu0 0.0
    %421 = vmatprep.subr.mxu0 0.0
    %422 = vmatpush1.msra.mxu0 0.0
    %423 = vmatprep.mubr.f32.mxu0 0.0
    %v424 = vand.u32 %v41, 4294901760
    %v425 = vsub.f32 %v41, %v424
    %v426 = vand.u32 %v425, 4294901760
    %427 = vmatmul.mubr.f32.gmra.mrb[0].mxu0 %v426
    %v428 = vpop.f32.mrb[0].mxu0
    %v429 = vadd.f32 %v341, %v428
    %v430 = vpop.f32.mrb[0].mxu0
    %431 = vmatprep.mubr.f32.mxu0 0.0
    %v432 = vand.u32 %v44, 4294901760
    %v433 = vsub.f32 %v44, %v432
    %v434 = vand.u32 %v433, 4294901760
    %435 = vmatmul.mubr.f32.gmra.mrb[0].mxu0 %v434
    %v436 = vpop.f32.mrb[0].mxu0
    %v437 = vadd.f32 %v348, %v436
    %v438 = vpop.f32.mrb[0].mxu0
    %439 = vdwg.mxu0
    %440 = vmatprep.subr.mxu0 0.0
    %v441 = vand.u32 %v31, 4294901760
    %v442 = vsub.f32 %v31, %v441
    %v443 = vand.u32 %v442, 4294901760
    %444 = vmatpush1.msra.mxu0 %v443
    %445 = vmatprep.subr.mxu0 0.0
    %v446 = vand.u32 %v32, 4294901760
    %v447 = vsub.f32 %v32, %v446
    %v448 = vand.u32 %v447, 4294901760
    %449 = vmatpush1.msra.mxu0 %v448
    %450 = vmatprep.subr.mxu0 0.0
    %v451 = vand.u32 %v33, 4294901760
    %v452 = vsub.f32 %v33, %v451
    %v453 = vand.u32 %v452, 4294901760
    %454 = vmatpush1.msra.mxu0 %v453
    %455 = vmatprep.subr.mxu0 0.0
    %v456 = vand.u32 %v34, 4294901760
    %v457 = vsub.f32 %v34, %v456
    %v458 = vand.u32 %v457, 4294901760
    %459 = vmatpush1.msra.mxu0 %v458
    %460 = vmatprep.subr.mxu0 0.0
    %v461 = vand.u32 %v35, 4294901760
    %v462 = vsub.f32 %v35, %v461
    %v463 = vand.u32 %v462, 4294901760
    %464 = vmatpush1.msra.mxu0 %v463
    %465 = vmatprep.subr.mxu0 0.0
    %v466 = vand.u32 %v36, 4294901760
    %v467 = vsub.f32 %v36, %v466
    %v468 = vand.u32 %v467, 4294901760
    %469 = vmatpush1.msra.mxu0 %v468
    %470 = vmatprep.subr.mxu0 0.0
    %v471 = vand.u32 %v37, 4294901760
    %v472 = vsub.f32 %v37, %v471
    %v473 = vand.u32 %v472, 4294901760
    %474 = vmatpush1.msra.mxu0 %v473
    %475 = vmatprep.subr.mxu0 0.0
    %v476 = vand.u32 %v38, 4294901760
    %v477 = vsub.f32 %v38, %v476
    %v478 = vand.u32 %v477, 4294901760
    %479 = vmatpush1.msra.mxu0 %v478
    %480 = vmatprep.subr.mxu0 0.0
    %481 = vmatpush1.msra.mxu0 0.0
    %482 = vmatprep.subr.mxu0 0.0
    %483 = vmatpush1.msra.mxu0 0.0
    %484 = vmatprep.subr.mxu0 0.0
    %485 = vmatpush1.msra.mxu0 0.0
    %486 = vmatprep.subr.mxu0 0.0
    %487 = vmatpush1.msra.mxu0 0.0
    %488 = vmatprep.subr.mxu0 0.0
    %489 = vmatpush1.msra.mxu0 0.0
    %490 = vmatprep.subr.mxu0 0.0
    %491 = vmatpush1.msra.mxu0 0.0
    %492 = vmatprep.subr.mxu0 0.0
    %493 = vmatpush1.msra.mxu0 0.0
    %494 = vmatprep.subr.mxu0 0.0
    %495 = vmatpush1.msra.mxu0 0.0
    %496 = vmatprep.subr.mxu0 0.0
    %497 = vmatpush1.msra.mxu0 0.0
    %498 = vmatprep.subr.mxu0 0.0
    %499 = vmatpush1.msra.mxu0 0.0
    %500 = vmatprep.subr.mxu0 0.0
    %501 = vmatpush1.msra.mxu0 0.0
    %502 = vmatprep.subr.mxu0 0.0
    %503 = vmatpush1.msra.mxu0 0.0
    %504 = vmatprep.subr.mxu0 0.0
    %505 = vmatpush1.msra.mxu0 0.0
    %506 = vmatprep.subr.mxu0 0.0
    %507 = vmatpush1.msra.mxu0 0.0
    %508 = vmatprep.subr.mxu0 0.0
    %509 = vmatpush1.msra.mxu0 0.0
    %510 = vmatprep.subr.mxu0 0.0
    %511 = vmatpush1.msra.mxu0 0.0
    %512 = vmatprep.subr.mxu0 0.0
    %513 = vmatpush1.msra.mxu0 0.0
    %514 = vmatprep.subr.mxu0 0.0
    %515 = vmatpush1.msra.mxu0 0.0
    %516 = vmatprep.subr.mxu0 0.0
    %517 = vmatpush1.msra.mxu0 0.0
    %518 = vmatprep.subr.mxu0 0.0
    %519 = vmatpush1.msra.mxu0 0.0
    %520 = vmatprep.subr.mxu0 0.0
    %521 = vmatpush1.msra.mxu0 0.0
    %522 = vmatprep.subr.mxu0 0.0
    %523 = vmatpush1.msra.mxu0 0.0
    %524 = vmatprep.subr.mxu0 0.0
    %525 = vmatpush1.msra.mxu0 0.0
    %526 = vmatprep.subr.mxu0 0.0
    %527 = vmatpush1.msra.mxu0 0.0
    %528 = vmatprep.mubr.f32.mxu0 0.0
    %v529 = vand.u32 %v41, 4294901760
    %530 = vmatmul.mubr.f32.gmra.mrb[0].mxu0 %v529
    %v531 = vpop.f32.mrb[0].mxu0
    %v532 = vadd.f32 %v429, %v531
    %v533 = vpop.f32.mrb[0].mxu0
    %534 = vmatprep.mubr.f32.mxu0 0.0
    %v535 = vand.u32 %v44, 4294901760
    %536 = vmatmul.mubr.f32.gmra.mrb[0].mxu0 %v535
    %v537 = vpop.f32.mrb[0].mxu0
    %v538 = vadd.f32 %v437, %v537
    %v539 = vpop.f32.mrb[0].mxu0
    %540 = vdwg.mxu0
    %541 = vmatprep.subr.mxu0 0.0
    %v542 = vand.u32 %v31, 4294901760
    %543 = vmatpush1.msra.mxu0 %v542
    %544 = vmatprep.subr.mxu0 0.0
    %v545 = vand.u32 %v32, 4294901760
    %546 = vmatpush1.msra.mxu0 %v545
    %547 = vmatprep.subr.mxu0 0.0
    %v548 = vand.u32 %v33, 4294901760
    %549 = vmatpush1.msra.mxu0 %v548
    %550 = vmatprep.subr.mxu0 0.0
    %v551 = vand.u32 %v34, 4294901760
    %552 = vmatpush1.msra.mxu0 %v551
    %553 = vmatprep.subr.mxu0 0.0
    %v554 = vand.u32 %v35, 4294901760
    %555 = vmatpush1.msra.mxu0 %v554
    %556 = vmatprep.subr.mxu0 0.0
    %v557 = vand.u32 %v36, 4294901760
    %558 = vmatpush1.msra.mxu0 %v557
    %559 = vmatprep.subr.mxu0 0.0
    %v560 = vand.u32 %v37, 4294901760
    %561 = vmatpush1.msra.mxu0 %v560
    %562 = vmatprep.subr.mxu0 0.0
    %v563 = vand.u32 %v38, 4294901760
    %564 = vmatpush1.msra.mxu0 %v563
    %565 = vmatprep.subr.mxu0 0.0
    %566 = vmatpush1.msra.mxu0 0.0
    %567 = vmatprep.subr.mxu0 0.0
    %568 = vmatpush1.msra.mxu0 0.0
    %569 = vmatprep.subr.mxu0 0.0
    %570 = vmatpush1.msra.mxu0 0.0
    %571 = vmatprep.subr.mxu0 0.0
    %572 = vmatpush1.msra.mxu0 0.0
    %573 = vmatprep.subr.mxu0 0.0
    %574 = vmatpush1.msra.mxu0 0.0
    %575 = vmatprep.subr.mxu0 0.0
    %576 = vmatpush1.msra.mxu0 0.0
    %577 = vmatprep.subr.mxu0 0.0
    %578 = vmatpush1.msra.mxu0 0.0
    %579 = vmatprep.subr.mxu0 0.0
    %580 = vmatpush1.msra.mxu0 0.0
    %581 = vmatprep.subr.mxu0 0.0
    %582 = vmatpush1.msra.mxu0 0.0
    %583 = vmatprep.subr.mxu0 0.0
    %584 = vmatpush1.msra.mxu0 0.0
    %585 = vmatprep.subr.mxu0 0.0
    %586 = vmatpush1.msra.mxu0 0.0
    %587 = vmatprep.subr.mxu0 0.0
    %588 = vmatpush1.msra.mxu0 0.0
    %589 = vmatprep.subr.mxu0 0.0
    %590 = vmatpush1.msra.mxu0 0.0
    %591 = vmatprep.subr.mxu0 0.0
    %592 = vmatpush1.msra.mxu0 0.0
    %593 = vmatprep.subr.mxu0 0.0
    %594 = vmatpush1.msra.mxu0 0.0
    %595 = vmatprep.subr.mxu0 0.0
    %596 = vmatpush1.msra.mxu0 0.0
    %597 = vmatprep.subr.mxu0 0.0
    %598 = vmatpush1.msra.mxu0 0.0
    %599 = vmatprep.subr.mxu0 0.0
    %600 = vmatpush1.msra.mxu0 0.0
    %601 = vmatprep.subr.mxu0 0.0
    %602 = vmatpush1.msra.mxu0 0.0
    %603 = vmatprep.subr.mxu0 0.0
    %604 = vmatpush1.msra.mxu0 0.0
    %605 = vmatprep.subr.mxu0 0.0
    %606 = vmatpush1.msra.mxu0 0.0
    %607 = vmatprep.subr.mxu0 0.0
    %608 = vmatpush1.msra.mxu0 0.0
    %609 = vmatprep.subr.mxu0 0.0
    %610 = vmatpush1.msra.mxu0 0.0
    %611 = vmatprep.subr.mxu0 0.0
    %612 = vmatpush1.msra.mxu0 0.0
    %613 = vmatprep.mubr.f32.mxu0 0.0
    %v614 = vand.u32 %v41, 4294901760
    %615 = vmatmul.mubr.f32.gmra.mrb[0].mxu0 %v614
    %v616 = vpop.f32.mrb[0].mxu0
    %v617 = vadd.f32 %v532, %v616
    %v618 = vpop.f32.mrb[0].mxu0
    %619 = vmatprep.mubr.f32.mxu0 0.0
    %v620 = vand.u32 %v44, 4294901760
    %621 = vmatmul.mubr.f32.gmra.mrb[0].mxu0 %v620
    %v622 = vpop.f32.mrb[0].mxu0
    %v623 = vadd.f32 %v538, %v622
    %v624 = vpop.f32.mrb[0].mxu0
    %625 = vdwg.mxu0
    %p626 = scmp.eq.s32.totalorder 0, 0
    // Predicated region
    $region10: #{tpu_custom_call.1} parent=1 // pred_check
      %p627 = pneg %p626
    $region11: #{tpu_custom_call.1} parent=1 // pred_check_branch
      %629 = sbr.rel (%p627) target = $region13
    $region12: #{tpu_custom_call.1} parent=1 // pred_region
      %vm630 = vcmask 261120
      %631 = vst.msk [vmem:[#allocation2] sm:$0xff] %vm630, %v617
      %632 = vst.msk [vmem:[#allocation2 + $0x8] sm:$0xff] %vm630, %v623
    $region13: #{tpu_custom_call.1} parent=1 // pred_fallthru
      _
    %p633 = scmp.gt.s32.totalorder 0, 0
    // Predicated region
    $region14: #{tpu_custom_call.1} parent=1 // pred_check
      %p634 = pneg %p633
    $region15: #{tpu_custom_call.1} parent=1 // pred_check_branch
      %636 = sbr.rel (%p634) target = $region17
    $region16: #{tpu_custom_call.1} parent=1 // pred_region
      %v637 = vld [vmem:[#allocation2] sm:$0xff]
      %v638 = vld [vmem:[#allocation2 + $0x8] sm:$0xff]
      %v639 = vadd.f32 %v637, %v617
      %v640 = vadd.f32 %v638, %v623
      %vm641 = vcmask 261120
      %642 = vst.msk [vmem:[#allocation2] sm:$0xff] %vm641, %v639
      %643 = vst.msk [vmem:[#allocation2 + $0x8] sm:$0xff] %vm641, %v640
    $region17: #{tpu_custom_call.1} parent=1 // pred_fallthru
      _
    // Predicated region
    $region18: #{tpu_custom_call.1} parent=1 // pred_check
      _
    $region19: #{tpu_custom_call.1} parent=1 // pred_check_branch
      %645 = sbr.rel (0) target = $region21
    $region20: #{tpu_custom_call.1} parent=1 // pred_region
      %s647 = ssub.s32 256, 256
      %648 = vsyncadd [#allocation3], %s647
      %s649 = sshll.u32 [#allocation2], 4
      %s650 = int_to_ptr.vmem [resolvable:$true] %s649
      %655 = dma.vmem_to_hbm [thread:$0]  %s650, 256, %s2, [#allocation3], 128, 128, 8
    $region21: #{tpu_custom_call.1} parent=1 // pred_fallthru
      _
    // Predicated region
    $region22: #{tpu_custom_call.1} parent=1 // pred_check
      _
    $region23: #{tpu_custom_call.1} parent=1 // pred_check_branch
      %657 = sbr.rel (0) target = $region25
    $region24: #{tpu_custom_call.1} parent=1 // pred_region
      %658 = dma.done [#allocation3], 256
    $region25: #{tpu_custom_call.1} parent=1 // pred_fallthru
      _
    %659 = vsyncpa [#allocation3], 1

</llo_original>
